<compile_context>
chip_gen: v7x
topology: tpu7x:2x2x1
jax: 0.10.0
libtpu: 0.0.40
codegen_flags: <defaults>
</compile_context>

<pallas_src>
import jax
import jax.numpy as jnp
from jax import lax
from jax.experimental import pallas as pl
from jax.experimental.pallas import tpu as pltpu

NN_NUM_INPUTS = 8        # NN_num_inputs
FISHER_NUM_INPUTS = 8    # fisher_num_inputs
NN_NUM_OUTPUTS = 10      # hard-coded in Value.__init__
H1, H2 = 64, 48          # FeatureExtractor hidden sizes
FEAT_PAD = 16            # feature / value-head width padded to 16 lanes
PACK_COLS = FEAT_PAD     # cols 0..9 = scaled feats, col 10 = value (10..15 value broadcast)
W_ROWS = NN_NUM_INPUTS + H1 + H2   # 120 rows in the packed weight slab
BATCH = 16


def _round_up(n, m):
    return (n + m - 1) // m * m


# ----------------------------------------------------------------------------
# Fused kernel: FeatureExtractor + value_head + scale_to_bounds + fisher LinearKernel
# ----------------------------------------------------------------------------
def _value_fused_kernel(scal_ref, xn_ref, xf_ref, w_ref, vec_ref, out_ref):
    Bp = xn_ref.shape[0]

    # ---- unpack consolidated parameter slabs (static, tile-aligned views) ----
    w1 = w_ref[0:NN_NUM_INPUTS, :]                          # (8, 64)
    w2 = w_ref[NN_NUM_INPUTS:NN_NUM_INPUTS + H1, 0:H2]      # (64, 48)
    w3 = w_ref[NN_NUM_INPUTS + H1:W_ROWS, 0:FEAT_PAD]       # (48, 16)  cols 10..15 are zero
    b1 = vec_ref[0:1, 0:H1]                                 # (1, 64)
    b2 = vec_ref[1:2, 0:H2]                                 # (1, 48)
    b3 = vec_ref[2:3, 0:FEAT_PAD]                           # (1, 16)   lanes 10..15 zero
    wv = vec_ref[3:4, 0:FEAT_PAD]                           # (1, 16)   lanes 10..15 zero

    # ---- FeatureExtractor: 3x (Linear + tanh) ----
    h = jnp.tanh(jnp.dot(xn_ref[...], w1, preferred_element_type=jnp.float32) + b1)
    h = jnp.tanh(jnp.dot(h, w2, preferred_element_type=jnp.float32) + b2)
    f = jnp.tanh(jnp.dot(h, w3, preferred_element_type=jnp.float32) + b3)   # (Bp, 16); lanes 10..15 = tanh(0) = 0

    # ---- value_head (nn_forward): VPU multiply + lane reduce (wv padded with zeros) ----
    value = jnp.sum(f * wv, axis=-1, keepdims=True) + scal_ref[1]           # (Bp, 1)

    # ---- gpytorch.utils.grid.scale_to_bounds(f, -1, 1) ----
    col = lax.broadcasted_iota(jnp.int32, (Bp, FEAT_PAD), 1)
    feat_mask = col < NN_NUM_OUTPUTS
    # padded lanes are excluded from the global min/max with +/-inf fills
    fmin = jnp.min(jnp.min(jnp.where(feat_mask, f, jnp.inf), axis=1, keepdims=True),
                   axis=0, keepdims=True)                                    # (1, 1)
    fmax = jnp.max(jnp.max(jnp.where(feat_mask, f, -jnp.inf), axis=1, keepdims=True),
                   axis=0, keepdims=True)                                    # (1, 1)
    inv = pl.reciprocal(jnp.maximum(fmax - fmin, 1e-8), approx=True)         # EUP slot + eps guard
    feats = (f - fmin) * (0.95 * 2.0 * inv) - 0.95                           # (Bp, 16)

    # ---- packed (feats | value) sub-slab built in registers with a lane mask ----
    packed = jnp.where(feat_mask, feats, value)                              # (Bp, 16)

    # ---- fisher LinearKernel: scale folded into the (Bp, 8) operand, not the (Bp, Bp) result ----
    # NOTE: contracting dim 1 of the RHS implies an xf transpose; acceptable at (Bp, 8).
    xf = xf_ref[...]
    cov = lax.dot_general(scal_ref[0] * xf, xf, (((1,), (1,)), ((), ())),
                          preferred_element_type=jnp.float32)                # (Bp, Bp)

    # ---- single lane-dense output slab, one unmasked full-width store ----
    W = out_ref.shape[1]
    parts = [packed, cov]
    rem = W - PACK_COLS - Bp
    if rem > 0:
        parts.append(jnp.zeros((Bp, rem), jnp.float32))
    out_ref[...] = jnp.concatenate(parts, axis=1)


# ----------------------------------------------------------------------------
# Wrapper
# ----------------------------------------------------------------------------
def value_fused_forward(x, wslab, vslab, bv, fisher_scale):
    """One fused launch. Returns (value [B,1], scaled features [B,10], fisher covar [B,B]).

    Callers should stack as many states/timesteps as possible into x's batch dim to amortize
    the fixed launch + DMA latency of this tiny kernel (rows up to ~128-256 are essentially free).
    """
    B = x.shape[0]
    Bp = _round_up(max(B, 8), 8)
    pad = Bp - B
    if pad:
        # edge-padding duplicates existing rows -> global fmin/fmax (scale_to_bounds) stay exact
        x = jnp.pad(x, ((0, pad), (0, 0)), mode="edge")

    xn = x[:, :NN_NUM_INPUTS]
    xf = x[:, NN_NUM_INPUTS:NN_NUM_INPUTS + FISHER_NUM_INPUTS]
    scal = jnp.stack([jnp.asarray(fisher_scale, jnp.float32),
                      jnp.asarray(bv, jnp.float32)])                     # [fisher scale, value bias]

    slab_w = _round_up(PACK_COLS + Bp, 128)                              # lane-dense output width
    out = pl.pallas_call(
        _value_fused_kernel,
        out_shape=jax.ShapeDtypeStruct((Bp, slab_w), jnp.float32),
        # Grid-less call: single invocation, everything resident in VMEM (< 100 KB at these sizes).
        in_specs=[
            pl.BlockSpec(memory_space=pltpu.MemorySpace.SMEM),   # [fisher scale, value bias]
            pl.BlockSpec(memory_space=pltpu.MemorySpace.VMEM),   # xn (Bp, 8)
            pl.BlockSpec(memory_space=pltpu.MemorySpace.VMEM),   # xf (Bp, 8)
            pl.BlockSpec(memory_space=pltpu.MemorySpace.VMEM),   # packed weight slab (120, 64)
            pl.BlockSpec(memory_space=pltpu.MemorySpace.VMEM),   # packed bias/vector slab (8, 128)
        ],
        out_specs=pl.BlockSpec(memory_space=pltpu.MemorySpace.VMEM),
    )(scal, xn, xf, wslab, vslab)

    feats = out[:B, :NN_NUM_OUTPUTS]
    value = out[:B, NN_NUM_OUTPUTS:NN_NUM_OUTPUTS + 1]
    covar = out[:B, PACK_COLS:PACK_COLS + B]
    return value, feats, covar


# ----------------------------------------------------------------------------
# Parameter init (mimics torch.nn.Linear default U(-1/sqrt(in), 1/sqrt(in))) and slab packing
# ----------------------------------------------------------------------------
def init_params(key):
    def linear(key, fan_in, fan_out):
        kw, kb = jax.random.split(key)
        bound = 1.0 / jnp.sqrt(fan_in)
        w = jax.random.uniform(kw, (fan_in, fan_out), jnp.float32, -bound, bound)   # [in, out]
        b = jax.random.uniform(kb, (1, fan_out), jnp.float32, -bound, bound)
        return w, b

    k1, k2, k3, k4 = jax.random.split(key, 4)
    w1, b1 = linear(k1, NN_NUM_INPUTS, H1)
    w2, b2 = linear(k2, H1, H2)
    w3, b3 = linear(k3, H2, NN_NUM_OUTPUTS)
    wv, bv = linear(k4, NN_NUM_OUTPUTS, 1)
    wv_row = wv.reshape(1, NN_NUM_OUTPUTS) * 0.1   # value_head.weight.data.mul_(0.1)
    bv = bv * 0.0                                  # value_head.bias.data.mul_(0.0)
    return (w1, b1, w2, b2, w3, b3, wv_row, bv)


def pack_params(params):
    """Consolidate all parameters into 2 DMA-friendly slabs + 1 scalar (done once at init time)."""
    w1, b1, w2, b2, w3, b3, wv_row, bv = params
    wslab = jnp.zeros((W_ROWS, H1), jnp.float32)
    wslab = wslab.at[0:NN_NUM_INPUTS, :H1].set(w1)
    wslab = wslab.at[NN_NUM_INPUTS:NN_NUM_INPUTS + H1, :H2].set(w2)
    wslab = wslab.at[NN_NUM_INPUTS + H1:W_ROWS, :NN_NUM_OUTPUTS].set(w3)

    vslab = jnp.zeros((8, 128), jnp.float32)
    vslab = vslab.at[0, :H1].set(b1.reshape(H1))
    vslab = vslab.at[1, :H2].set(b2.reshape(H2))
    vslab = vslab.at[2, :NN_NUM_OUTPUTS].set(b3.reshape(NN_NUM_OUTPUTS))
    vslab = vslab.at[3, :NN_NUM_OUTPUTS].set(wv_row.reshape(NN_NUM_OUTPUTS))

    bv_scalar = jnp.asarray(bv, jnp.float32).reshape(())
    return wslab, vslab, bv_scalar


# Pure-JAX reference for correctness checking.
def _reference(x, params):
    w1, b1, w2, b2, w3, b3, wv_row, bv = params
    xn = x[:, :NN_NUM_INPUTS]
    h = jnp.tanh(xn @ w1 + b1)
    h = jnp.tanh(h @ w2 + b2)
    f = jnp.tanh(h @ w3 + b3)
    val = f @ wv_row.T + bv
    fmin, fmax = jnp.min(f), jnp.max(f)
    feats = (f - fmin) * (0.95 * 2.0 / (fmax - fmin)) - 0.95
    return val, feats


if __name__ == "__main__":
    key = jax.random.PRNGKey(0)
    kx, kp = jax.random.split(key)

    params = init_params(kp)
    wslab, vslab, bv = pack_params(params)

    # BQ-path scalar hyperparameters (gpytorch init values), folded into one fisher scale.
    fisher_multiplier = jnp.float32(0.5)
    linear_kernel_variance = jnp.float32(1.0)   # LinearKernel variance param (init 1)
    fisher_scale = fisher_multiplier * linear_kernel_variance

    fwd = jax.jit(value_fused_forward)

    # B=16 is the nominal small shape; B=20 exercises the sublane edge-padding path.
    for B in (BATCH, 20):
        x = jax.random.normal(jax.random.fold_in(kx, B),
                              (B, NN_NUM_INPUTS + FISHER_NUM_INPUTS), jnp.float32)
        value, feats, covar_fisher = fwd(x, wslab, vslab, bv, fisher_scale)
        value, feats, covar_fisher = jax.block_until_ready((value, feats, covar_fisher))

        ref_val, ref_feats = _reference(x, params)
        xf = x[:, NN_NUM_INPUTS:]
        ref_cov = fisher_scale * (xf @ xf.T)
        assert jnp.allclose(value, ref_val, atol=1e-4), "value head mismatch"
        # feats tolerance covers the EUP approximate-reciprocal in scale_to_bounds
        assert jnp.allclose(feats, ref_feats, atol=5e-3), "scaled feature mismatch"
        assert jnp.allclose(covar_fisher, ref_cov, atol=1e-4), "fisher linear covar mismatch"

    # ConstantMean (init 0): a scalar broadcast, kept as plain-JAX glue.
    mean_constant = jnp.float32(0.0)
    mean_x = jnp.full((BATCH,), mean_constant)
    # TODO(synk): state_multiplier * AdditiveStructureKernel(ScaleKernel(GridInterpolationKernel(RBF)))
    # state kernel and the gpytorch MultivariateNormal / LazyTensor construction have no clean
    # Pallas equivalent.

    print("KERNEL_OK")
</pallas_src>

<mosaic_0001>
module attributes {stable_mosaic.version = 11 : i64} {
  func.func @_value_fused_kernel(%arg0: memref<2xf32, #tpu.memory_space<smem>>, %arg1: memref<16x8xf32, #tpu.memory_space<vmem>>, %arg2: memref<16x8xf32, #tpu.memory_space<vmem>>, %arg3: memref<120x64xf32, #tpu.memory_space<vmem>>, %arg4: memref<8x128xf32, #tpu.memory_space<vmem>>, %arg5: memref<16x128xf32, #tpu.memory_space<vmem>>) attributes {dimension_semantics = [], scalar_prefetch = 0 : i64, scratch_operands = 0 : i64, tpu.core_type = #tpu.core_type<tc>} {
    %c0 = arith.constant 0 : index
    %c0_0 = arith.constant 0 : index
    %0 = vector.load %arg3[%c0, %c0_0] : memref<120x64xf32, #tpu.memory_space<vmem>>, vector<8x64xf32>
    %c8 = arith.constant 8 : index
    %c0_1 = arith.constant 0 : index
    %1 = vector.load %arg3[%c8, %c0_1] : memref<120x64xf32, #tpu.memory_space<vmem>>, vector<64x48xf32>
    %c72 = arith.constant 72 : index
    %c0_2 = arith.constant 0 : index
    %2 = vector.load %arg3[%c72, %c0_2] : memref<120x64xf32, #tpu.memory_space<vmem>>, vector<48x16xf32>
    %c0_3 = arith.constant 0 : index
    %c0_4 = arith.constant 0 : index
    %3 = vector.load %arg4[%c0_3, %c0_4] : memref<8x128xf32, #tpu.memory_space<vmem>>, vector<1x64xf32>
    %c1 = arith.constant 1 : index
    %c0_5 = arith.constant 0 : index
    %4 = vector.load %arg4[%c1, %c0_5] : memref<8x128xf32, #tpu.memory_space<vmem>>, vector<1x48xf32>
    %c2 = arith.constant 2 : index
    %c0_6 = arith.constant 0 : index
    %5 = vector.load %arg4[%c2, %c0_6] : memref<8x128xf32, #tpu.memory_space<vmem>>, vector<1x16xf32>
    %c3 = arith.constant 3 : index
    %c0_7 = arith.constant 0 : index
    %6 = vector.load %arg4[%c3, %c0_7] : memref<8x128xf32, #tpu.memory_space<vmem>>, vector<1x16xf32>
    %c0_8 = arith.constant 0 : index
    %c0_9 = arith.constant 0 : index
    %7 = vector.load %arg1[%c0_8, %c0_9] : memref<16x8xf32, #tpu.memory_space<vmem>>, vector<16x8xf32>
    %cst = arith.constant dense<0.000000e+00> : vector<16x64xf32>
    %8 = tpu.matmul %7, %0, %cst {dimension_numbers = #tpu.dot_dimension_numbers<[1], [0], [0], [1], [0, 0, 1, 1], [], []>} : vector<16x8xf32>, vector<8x64xf32>, vector<16x64xf32> -> vector<16x64xf32>
    %9 = vector.broadcast %3 : vector<1x64xf32> to vector<16x64xf32>
    %10 = arith.addf %8, %9 : vector<16x64xf32>
    %11 = math.tanh %10 : vector<16x64xf32>
    %cst_10 = arith.constant dense<0.000000e+00> : vector<16x48xf32>
    %12 = tpu.matmul %11, %1, %cst_10 {dimension_numbers = #tpu.dot_dimension_numbers<[1], [0], [0], [1], [0, 0, 1, 1], [], []>} : vector<16x64xf32>, vector<64x48xf32>, vector<16x48xf32> -> vector<16x48xf32>
    %13 = vector.broadcast %4 : vector<1x48xf32> to vector<16x48xf32>
    %14 = arith.addf %12, %13 : vector<16x48xf32>
    %15 = math.tanh %14 : vector<16x48xf32>
    %cst_11 = arith.constant dense<0.000000e+00> : vector<16x16xf32>
    %16 = tpu.matmul %15, %2, %cst_11 {dimension_numbers = #tpu.dot_dimension_numbers<[1], [0], [0], [1], [0, 0, 1, 1], [], []>} : vector<16x48xf32>, vector<48x16xf32>, vector<16x16xf32> -> vector<16x16xf32>
    %17 = vector.broadcast %5 : vector<1x16xf32> to vector<16x16xf32>
    %18 = arith.addf %16, %17 : vector<16x16xf32>
    %19 = math.tanh %18 : vector<16x16xf32>
    %20 = vector.broadcast %6 : vector<1x16xf32> to vector<16x16xf32>
    %21 = arith.mulf %19, %20 : vector<16x16xf32>
    %cst_12 = arith.constant dense<0.000000e+00> : vector<16xf32>
    %22 = vector.multi_reduction <add>, %21, %cst_12 [1] : vector<16x16xf32> to vector<16xf32>
    %23 = vector.shape_cast %22 : vector<16xf32> to vector<16x1xf32>
    %c1_13 = arith.constant 1 : index
    %24 = memref.load %arg0[%c1_13] : memref<2xf32, #tpu.memory_space<smem>>
    %25 = vector.broadcast %24 : f32 to vector<16x1xf32>
    %26 = arith.addf %23, %25 : vector<16x1xf32>
    %27 = tpu.iota {dimensions = array<i32: 1>} : vector<16x16xi32>
    %c10_i32 = arith.constant 10 : i32
    %28 = vector.broadcast %c10_i32 : i32 to vector<16x16xi32>
    %29 = arith.cmpi slt, %27, %28 : vector<16x16xi32>
    %cst_14 = arith.constant 0x7F800000 : f32
    %30 = vector.broadcast %cst_14 : f32 to vector<16x16xf32>
    %31 = arith.select %29, %19, %30 : vector<16x16xi1>, vector<16x16xf32>
    %cst_15 = arith.constant dense<0x7F800000> : vector<16xf32>
    %32 = vector.multi_reduction <minimumf>, %31, %cst_15 [1] : vector<16x16xf32> to vector<16xf32>
    %33 = vector.shape_cast %32 : vector<16xf32> to vector<16x1xf32>
    %cst_16 = arith.constant dense<0x7F800000> : vector<1xf32>
    %34 = vector.multi_reduction <minimumf>, %33, %cst_16 [0] : vector<16x1xf32> to vector<1xf32>
    %35 = vector.shape_cast %34 : vector<1xf32> to vector<1x1xf32>
    %cst_17 = arith.constant 0xFF800000 : f32
    %36 = vector.broadcast %cst_17 : f32 to vector<16x16xf32>
    %37 = arith.select %29, %19, %36 : vector<16x16xi1>, vector<16x16xf32>
    %cst_18 = arith.constant dense<0xFF800000> : vector<16xf32>
    %38 = vector.multi_reduction <maximumf>, %37, %cst_18 [1] : vector<16x16xf32> to vector<16xf32>
    %39 = vector.shape_cast %38 : vector<16xf32> to vector<16x1xf32>
    %cst_19 = arith.constant dense<0xFF800000> : vector<1xf32>
    %40 = vector.multi_reduction <maximumf>, %39, %cst_19 [0] : vector<16x1xf32> to vector<1xf32>
    %41 = vector.shape_cast %40 : vector<1xf32> to vector<1x1xf32>
    %42 = arith.subf %41, %35 : vector<1x1xf32>
    %cst_20 = arith.constant 9.99999993E-9 : f32
    %43 = vector.broadcast %cst_20 : f32 to vector<1x1xf32>
    %44 = arith.maximumf %42, %43 : vector<1x1xf32>
    %45 = tpu.reciprocal %44 {approx = true} : vector<1x1xf32> -> vector<1x1xf32>
    %46 = vector.broadcast %35 : vector<1x1xf32> to vector<16x16xf32>
    %47 = arith.subf %19, %46 : vector<16x16xf32>
    %cst_21 = arith.constant 1.900000e+00 : f32
    %48 = vector.broadcast %cst_21 : f32 to vector<1x1xf32>
    %49 = arith.mulf %48, %45 : vector<1x1xf32>
    %50 = vector.broadcast %49 : vector<1x1xf32> to vector<16x16xf32>
    %51 = arith.mulf %47, %50 : vector<16x16xf32>
    %cst_22 = arith.constant 0.949999988 : f32
    %52 = vector.broadcast %cst_22 : f32 to vector<16x16xf32>
    %53 = arith.subf %51, %52 : vector<16x16xf32>
    %54 = vector.shape_cast %26 : vector<16x1xf32> to vector<16x1xf32>
    %55 = vector.broadcast %54 : vector<16x1xf32> to vector<16x16xf32>
    %56 = arith.select %29, %53, %55 : vector<16x16xi1>, vector<16x16xf32>
    %c0_23 = arith.constant 0 : index
    %c0_24 = arith.constant 0 : index
    %57 = vector.load %arg2[%c0_23, %c0_24] : memref<16x8xf32, #tpu.memory_space<vmem>>, vector<16x8xf32>
    %c0_25 = arith.constant 0 : index
    %58 = memref.load %arg0[%c0_25] : memref<2xf32, #tpu.memory_space<smem>>
    %59 = vector.broadcast %58 : f32 to vector<16x8xf32>
    %60 = arith.mulf %59, %57 : vector<16x8xf32>
    %cst_26 = arith.constant dense<0.000000e+00> : vector<16x16xf32>
    %61 = tpu.matmul %60, %57, %cst_26 {dimension_numbers = #tpu.dot_dimension_numbers<[1], [1], [0], [0], [0, 0, 1, 0], [], []>} : vector<16x8xf32>, vector<16x8xf32>, vector<16x16xf32> -> vector<16x16xf32>
    %cst_27 = arith.constant 0.000000e+00 : f32
    %62 = vector.broadcast %cst_27 : f32 to vector<16x96xf32>
    %63 = tpu.concatenate %56, %61, %62 in 1 : vector<16x16xf32>, vector<16x16xf32>, vector<16x96xf32> -> vector<16x128xf32>
    %c0_28 = arith.constant 0 : index
    %c0_29 = arith.constant 0 : index
    %64 = vector.load %arg5[%c0_28, %c0_29] : memref<16x128xf32, #tpu.memory_space<vmem>>, vector<16x128xf32>
    tpu.vector_store %arg5[%c0_28, %c0_29], %63 {strides = array<i32>} : memref<16x128xf32, #tpu.memory_space<vmem>>, vector<16x128xf32>,
    return
  }
}

</mosaic_0001>

<llo_original>
// kernel: value_fused_forward.1
$region0: #{value_fused_forward.1}
  #allocation0 [shape = 'u32[]', space=smem, size = 0x4, offset = 0x4, fixed_abs, tag = 'smem constant byte address 0x4 - core index']
  #allocation1 [shape = 'u32[144,128]{1,0:T(1,128)}', space=vmem, size = 0x12000, scoped, tag = 'internal scratch']
  %s0 = inlined_call_operand.vmem [shape: f32[2], index: 0, kind: input, shape index: {}]
  %s1 = inlined_call_operand.vmem [shape: f32[16,8], index: 1, kind: input, shape index: {}]
  %s2 = inlined_call_operand.vmem [shape: f32[16,8], index: 2, kind: input, shape index: {}]
  %s3 = inlined_call_operand.vmem [shape: f32[120,64], index: 3, kind: input, shape index: {}]
  %s4 = inlined_call_operand.vmem [shape: f32[8,128], index: 4, kind: input, shape index: {}]
  %s5 = inlined_call_operand.vmem [shape: f32[16,128], index: 5, kind: output, shape index: {}]
  %s6 = sld [smem:[#allocation0]]
  $region34: #{value_fused_forward.1} parent=0
    _
  %s8 = ssub.s32 1, %s6
  %s9 = scalar_select 0, %s8, %s6
  $region1: #{value_fused_forward.1} parent=0
    #allocation2 [shape = 'u8[512]{0}', space=smem, size = 0x200, scoped, tag = 'input window, operand 0, single buffered']
    #allocation3 [shape = 's32[1]{0}', space=sflag, size = 0x4, scoped, tag = 'scoped memory for value_fused_forward.1']
    %10 = vsyncpa [#allocation3], 0
    // Predicated region
    $region2: #{value_fused_forward.1} parent=1 // pred_check
      _
    $region3: #{value_fused_forward.1} parent=1 // pred_check_branch
      %12 = sbr.rel (0) target = $region5
    $region4: #{value_fused_forward.1} parent=1 // pred_region
      %s14 = ssub.s32 16, 16
      %15 = vsyncadd [#allocation3], %s14
      %s17 = sshll.u32 %s0, 4
      %s18 = int_to_ptr.vmem [resolvable:$true] %s17
      %20 = dma.vmem_to_smem %s18, 16, [#allocation2], [#allocation3]
    $region5: #{value_fused_forward.1} parent=1 // pred_fallthru
      _
    // Predicated region
    $region6: #{value_fused_forward.1} parent=1 // pred_check
      _
    $region7: #{value_fused_forward.1} parent=1 // pred_check_branch
      %22 = sbr.rel (0) target = $region9
    $region8: #{value_fused_forward.1} parent=1 // pred_region
      _
    $region9: #{value_fused_forward.1} parent=1 // pred_fallthru
      _
    // Predicated region
    $region10: #{value_fused_forward.1} parent=1 // pred_check
      _
    $region11: #{value_fused_forward.1} parent=1 // pred_check_branch
      %24 = sbr.rel (0) target = $region13
    $region12: #{value_fused_forward.1} parent=1 // pred_region
      _
    $region13: #{value_fused_forward.1} parent=1 // pred_fallthru
      _
    // Predicated region
    $region14: #{value_fused_forward.1} parent=1 // pred_check
      _
    $region15: #{value_fused_forward.1} parent=1 // pred_check_branch
      %26 = sbr.rel (0) target = $region17
    $region16: #{value_fused_forward.1} parent=1 // pred_region
      _
    $region17: #{value_fused_forward.1} parent=1 // pred_fallthru
      _
    // Predicated region
    $region18: #{value_fused_forward.1} parent=1 // pred_check
      _
    $region19: #{value_fused_forward.1} parent=1 // pred_check_branch
      %28 = sbr.rel (0) target = $region21
    $region20: #{value_fused_forward.1} parent=1 // pred_region
      _
    $region21: #{value_fused_forward.1} parent=1 // pred_fallthru
      _
    // Predicated region
    $region22: #{value_fused_forward.1} parent=1 // pred_check
      _
    $region23: #{value_fused_forward.1} parent=1 // pred_check_branch
      %30 = sbr.rel (0) target = $region25
    $region24: #{value_fused_forward.1} parent=1 // pred_region
      %31 = dma.done [#allocation3], 16
    $region25: #{value_fused_forward.1} parent=1 // pred_fallthru
      _
    %32 = sfence
    %v33 = vld [vmem:[%s3] sm:$0xff]
    %v34 = vld [vmem:[%s3 + $0x8] sm:$0xff]
    %v35 = vld [vmem:[%s3 + $0x10] sm:$0xff]
    %v36 = vld [vmem:[%s3 + $0x18] sm:$0xff]
    %v37 = vld [vmem:[%s3 + $0x20] sm:$0xff]
    %v38 = vld [vmem:[%s3 + $0x28] sm:$0xff]
    %v39 = vld [vmem:[%s3 + $0x30] sm:$0xff]
    %v40 = vld [vmem:[%s3 + $0x38] sm:$0xff]
    %v41 = vld [vmem:[%s3 + $0x40] sm:$0xff]
    %v42 = vld [vmem:[%s3 + $0x48] sm:$0xff]
    %v43 = vld [vmem:[%s3 + $0x50] sm:$0xff]
    %v44 = vld [vmem:[%s3 + $0x58] sm:$0xff]
    %v45 = vld [vmem:[%s3 + $0x60] sm:$0xff]
    %v46 = vld [vmem:[%s3 + $0x68] sm:$0xff]
    %v47 = vld [vmem:[%s3 + $0x70] sm:$0xff]
    %v48 = vld [vmem:[%s4] sm:$0x1]
    %v49 = vld [vmem:[%s4 + $0x1] sm:$0x1]
    %v50 = vld [vmem:[%s4 + $0x2] sm:$0x1]
    %v51 = vld [vmem:[%s4 + $0x3] sm:$0x1]
    %v52 = vld [vmem:[%s1] sm:$0xff]
    %v53 = vld [vmem:[%s1 + $0x8] sm:$0xff]
    %v54 = vlaneseq
    %v55 = vshrl.u32 %v54, 7
    %v56 = vsub.s32 0, %v55
    %v57 = vrot.slane %v48, %v56
    %vm58 = vcmask 64512
    %v60 = vsel %vm58, %v52, 0
    %v63 = vsel %vm58, %v53, 0
    %65 = vmatprep.subr.mxu0 0.0
    %66 = vmatpush1.msra.mxu0 %v33
    %67 = vmatprep.subr.mxu0 0.0
    %68 = vmatpush1.msra.mxu0 0.0
    %69 = vmatprep.subr.mxu0 0.0
    %70 = vmatpush1.msra.mxu0 0.0
    %71 = vmatprep.subr.mxu0 0.0
    %72 = vmatpush1.msra.mxu0 0.0
    %73 = vmatprep.subr.mxu0 0.0
    %74 = vmatpush1.msra.mxu0 0.0
    %75 = vmatprep.subr.mxu0 0.0
    %76 = vmatpush1.msra.mxu0 0.0
    %77 = vmatprep.subr.mxu0 0.0
    %78 = vmatpush1.msra.mxu0 0.0
    %79 = vmatprep.subr.mxu0 0.0
    %80 = vmatpush1.msra.mxu0 0.0
    %81 = vmatprep.subr.mxu0 0.0
    %82 = vmatpush1.msra.mxu0 0.0
    %83 = vmatprep.subr.mxu0 0.0
    %84 = vmatpush1.msra.mxu0 0.0
    %85 = vmatprep.subr.mxu0 0.0
    %86 = vmatpush1.msra.mxu0 0.0
    %87 = vmatprep.subr.mxu0 0.0
    %88 = vmatpush1.msra.mxu0 0.0
    %89 = vmatprep.subr.mxu0 0.0
    %90 = vmatpush1.msra.mxu0 0.0
    %91 = vmatprep.subr.mxu0 0.0
    %92 = vmatpush1.msra.mxu0 0.0
    %93 = vmatprep.subr.mxu0 0.0
    %94 = vmatpush1.msra.mxu0 0.0
    %95 = vmatprep.subr.mxu0 0.0
    %96 = vmatpush1.msra.mxu0 0.0
    %97 = vmatprep.subr.mxu0 0.0
    %98 = vmatpush1.msra.mxu0 0.0
    %99 = vmatprep.subr.mxu0 0.0
    %100 = vmatpush1.msra.mxu0 0.0
    %101 = vmatprep.subr.mxu0 0.0
    %102 = vmatpush1.msra.mxu0 0.0
    %103 = vmatprep.subr.mxu0 0.0
    %104 = vmatpush1.msra.mxu0 0.0
    %105 = vmatprep.subr.mxu0 0.0
    %106 = vmatpush1.msra.mxu0 0.0
    %107 = vmatprep.subr.mxu0 0.0
    %108 = vmatpush1.msra.mxu0 0.0
    %109 = vmatprep.subr.mxu0 0.0
    %110 = vmatpush1.msra.mxu0 0.0
    %111 = vmatprep.subr.mxu0 0.0
    %112 = vmatpush1.msra.mxu0 0.0
    %113 = vmatprep.subr.mxu0 0.0
    %114 = vmatpush1.msra.mxu0 0.0
    %115 = vmatprep.subr.mxu0 0.0
    %116 = vmatpush1.msra.mxu0 0.0
    %117 = vmatprep.subr.mxu0 0.0
    %118 = vmatpush1.msra.mxu0 0.0
    %119 = vmatprep.subr.mxu0 0.0
    %120 = vmatpush1.msra.mxu0 0.0
    %121 = vmatprep.subr.mxu0 0.0
    %122 = vmatpush1.msra.mxu0 0.0
    %123 = vmatprep.subr.mxu0 0.0
    %124 = vmatpush1.msra.mxu0 0.0
    %125 = vmatprep.subr.mxu0 0.0
    %126 = vmatpush1.msra.mxu0 0.0
    %127 = vmatprep.subr.mxu0 0.0
    %128 = vmatpush1.msra.mxu0 0.0
    %129 = vmatprep.mubr.f32.mxu0 0.0
    %130 = vmatmul.mubr.f32.gmra.mrb[0].mxu0 %v60
    %v131 = vpop.f32.mrb[0].mxu0
    %v132 = vadd.f32 %v57, %v131
    %v133 = vpop.f32.mrb[0].mxu0
    %134 = vmatprep.mubr.f32.mxu0 0.0
    %135 = vmatmul.mubr.f32.gmra.mrb[0].mxu0 %v63
    %v136 = vpop.f32.mrb[0].mxu0
    %v137 = vadd.f32 %v57, %v136
    %v138 = vpop.f32.mrb[0].mxu0
    %139 = vdwg.mxu0
    %v140 = vtanh.pop %v132
    %v141 = vtanh.pop %v137
    %v142 = vlaneseq
    %v143 = vshrl.u32 %v142, 7
    %v144 = vsub.s32 0, %v143
    %v145 = vrot.slane %v49, %v144
    %vm146 = vcmask 523264
    %v148 = vsel %vm146, %v140, 0
    %v151 = vsel %vm146, %v141, 0
    %153 = vmatprep.subr.mxu0 0.0
    %154 = vmatpush1.msra.mxu0 %v34
    %155 = vmatprep.subr.mxu0 0.0
    %156 = vmatpush1.msra.mxu0 %v35
    %157 = vmatprep.subr.mxu0 0.0
    %158 = vmatpush1.msra.mxu0 %v36
    %159 = vmatprep.subr.mxu0 0.0
    %160 = vmatpush1.msra.mxu0 %v37
    %161 = vmatprep.subr.mxu0 0.0
    %162 = vmatpush1.msra.mxu0 %v38
    %163 = vmatprep.subr.mxu0 0.0
    %164 = vmatpush1.msra.mxu0 %v39
    %165 = vmatprep.subr.mxu0 0.0
    %166 = vmatpush1.msra.mxu0 %v40
    %167 = vmatprep.subr.mxu0 0.0
    %168 = vmatpush1.msra.mxu0 %v41
    %169 = vmatprep.subr.mxu0 0.0
    %170 = vmatpush1.msra.mxu0 0.0
    %171 = vmatprep.subr.mxu0 0.0
    %172 = vmatpush1.msra.mxu0 0.0
    %173 = vmatprep.subr.mxu0 0.0
    %174 = vmatpush1.msra.mxu0 0.0
    %175 = vmatprep.subr.mxu0 0.0
    %176 = vmatpush1.msra.mxu0 0.0
    %177 = vmatprep.subr.mxu0 0.0
    %178 = vmatpush1.msra.mxu0 0.0
    %179 = vmatprep.subr.mxu0 0.0
    %180 = vmatpush1.msra.mxu0 0.0
    %181 = vmatprep.subr.mxu0 0.0
    %182 = vmatpush1.msra.mxu0 0.0
    %183 = vmatprep.subr.mxu0 0.0
    %184 = vmatpush1.msra.mxu0 0.0
    %185 = vmatprep.subr.mxu0 0.0
    %186 = vmatpush1.msra.mxu0 0.0
    %187 = vmatprep.subr.mxu0 0.0
    %188 = vmatpush1.msra.mxu0 0.0
    %189 = vmatprep.subr.mxu0 0.0
    %190 = vmatpush1.msra.mxu0 0.0
    %191 = vmatprep.subr.mxu0 0.0
    %192 = vmatpush1.msra.mxu0 0.0
    %193 = vmatprep.subr.mxu0 0.0
    %194 = vmatpush1.msra.mxu0 0.0
    %195 = vmatprep.subr.mxu0 0.0
    %196 = vmatpush1.msra.mxu0 0.0
    %197 = vmatprep.subr.mxu0 0.0
    %198 = vmatpush1.msra.mxu0 0.0
    %199 = vmatprep.subr.mxu0 0.0
    %200 = vmatpush1.msra.mxu0 0.0
    %201 = vmatprep.subr.mxu0 0.0
    %202 = vmatpush1.msra.mxu0 0.0
    %203 = vmatprep.subr.mxu0 0.0
    %204 = vmatpush1.msra.mxu0 0.0
    %205 = vmatprep.subr.mxu0 0.0
    %206 = vmatpush1.msra.mxu0 0.0
    %207 = vmatprep.subr.mxu0 0.0
    %208 = vmatpush1.msra.mxu0 0.0
    %209 = vmatprep.subr.mxu0 0.0
    %210 = vmatpush1.msra.mxu0 0.0
    %211 = vmatprep.subr.mxu0 0.0
    %212 = vmatpush1.msra.mxu0 0.0
    %213 = vmatprep.subr.mxu0 0.0
    %214 = vmatpush1.msra.mxu0 0.0
    %215 = vmatprep.subr.mxu0 0.0
    %216 = vmatpush1.msra.mxu0 0.0
    %217 = vmatprep.mubr.f32.mxu0 0.0
    %218 = vmatmul.mubr.f32.gmra.mrb[0].mxu0 %v148
    %v219 = vpop.f32.mrb[0].mxu0
    %v220 = vadd.f32 %v145, %v219
    %v221 = vpop.f32.mrb[0].mxu0
    %222 = vmatprep.mubr.f32.mxu0 0.0
    %223 = vmatmul.mubr.f32.gmra.mrb[0].mxu0 %v151
    %v224 = vpop.f32.mrb[0].mxu0
    %v225 = vadd.f32 %v145, %v224
    %v226 = vpop.f32.mrb[0].mxu0
    %227 = vdwg.mxu0
    %v228 = vtanh.pop %v220
    %v229 = vtanh.pop %v225
    %v230 = vlaneseq
    %v231 = vshrl.u32 %v230, 7
    %v232 = vsub.s32 0, %v231
    %v233 = vrot.slane %v50, %v232
    %vm234 = vcmask 392192
    %v236 = vsel %vm234, %v228, 0
    %v239 = vsel %vm234, %v229, 0
    %241 = vmatprep.subr.mxu0 0.0
    %242 = vmatpush1.msra.mxu0 %v42
    %243 = vmatprep.subr.mxu0 0.0
    %244 = vmatpush1.msra.mxu0 %v43
    %245 = vmatprep.subr.mxu0 0.0
    %246 = vmatpush1.msra.mxu0 %v44
    %247 = vmatprep.subr.mxu0 0.0
    %248 = vmatpush1.msra.mxu0 %v45
    %249 = vmatprep.subr.mxu0 0.0
    %250 = vmatpush1.msra.mxu0 %v46
    %251 = vmatprep.subr.mxu0 0.0
    %252 = vmatpush1.msra.mxu0 %v47
    %253 = vmatprep.subr.mxu0 0.0
    %254 = vmatpush1.msra.mxu0 0.0
    %255 = vmatprep.subr.mxu0 0.0
    %256 = vmatpush1.msra.mxu0 0.0
    %257 = vmatprep.subr.mxu0 0.0
    %258 = vmatpush1.msra.mxu0 0.0
    %259 = vmatprep.subr.mxu0 0.0
    %260 = vmatpush1.msra.mxu0 0.0
    %261 = vmatprep.subr.mxu0 0.0
    %262 = vmatpush1.msra.mxu0 0.0
    %263 = vmatprep.subr.mxu0 0.0
    %264 = vmatpush1.msra.mxu0 0.0
    %265 = vmatprep.subr.mxu0 0.0
    %266 = vmatpush1.msra.mxu0 0.0
    %267 = vmatprep.subr.mxu0 0.0
    %268 = vmatpush1.msra.mxu0 0.0
    %269 = vmatprep.subr.mxu0 0.0
    %270 = vmatpush1.msra.mxu0 0.0
    %271 = vmatprep.subr.mxu0 0.0
    %272 = vmatpush1.msra.mxu0 0.0
    %273 = vmatprep.subr.mxu0 0.0
    %274 = vmatpush1.msra.mxu0 0.0
    %275 = vmatprep.subr.mxu0 0.0
    %276 = vmatpush1.msra.mxu0 0.0
    %277 = vmatprep.subr.mxu0 0.0
    %278 = vmatpush1.msra.mxu0 0.0
    %279 = vmatprep.subr.mxu0 0.0
    %280 = vmatpush1.msra.mxu0 0.0
    %281 = vmatprep.subr.mxu0 0.0
    %282 = vmatpush1.msra.mxu0 0.0
    %283 = vmatprep.subr.mxu0 0.0
    %284 = vmatpush1.msra.mxu0 0.0
    %285 = vmatprep.subr.mxu0 0.0
    %286 = vmatpush1.msra.mxu0 0.0
    %287 = vmatprep.subr.mxu0 0.0
    %288 = vmatpush1.msra.mxu0 0.0
    %289 = vmatprep.subr.mxu0 0.0
    %290 = vmatpush1.msra.mxu0 0.0
    %291 = vmatprep.subr.mxu0 0.0
    %292 = vmatpush1.msra.mxu0 0.0
    %293 = vmatprep.subr.mxu0 0.0
    %294 = vmatpush1.msra.mxu0 0.0
    %295 = vmatprep.subr.mxu0 0.0
    %296 = vmatpush1.msra.mxu0 0.0
    %297 = vmatprep.subr.mxu0 0.0
    %298 = vmatpush1.msra.mxu0 0.0
    %299 = vmatprep.subr.mxu0 0.0
    %300 = vmatpush1.msra.mxu0 0.0
    %301 = vmatprep.subr.mxu0 0.0
    %302 = vmatpush1.msra.mxu0 0.0
    %303 = vmatprep.subr.mxu0 0.0
    %304 = vmatpush1.msra.mxu0 0.0
    %305 = vmatprep.mubr.f32.mxu0 0.0
    %306 = vmatmul.mubr.f32.gmra.mrb[0].mxu0 %v236
    %v307 = vpop.f32.mrb[0].mxu0
    %v308 = vadd.f32 %v233, %v307
    %v309 = vpop.f32.mrb[0].mxu0
    %310 = vmatprep.mubr.f32.mxu0 0.0
    %311 = vmatmul.mubr.f32.gmra.mrb[0].mxu0 %v239
    %v312 = vpop.f32.mrb[0].mxu0
    %v313 = vadd.f32 %v233, %v312
    %v314 = vpop.f32.mrb[0].mxu0
    %315 = vdwg.mxu0
    %v316 = vtanh.pop %v308
    %v317 = vtanh.pop %v313
    %v318 = vlaneseq
    %v319 = vshrl.u32 %v318, 7
    %v320 = vsub.s32 0, %v319
    %v321 = vrot.slane %v51, %v320
    %v322 = vmul.f32 %v316, %v321
    %v323 = vmul.f32 %v317, %v321
    %vm324 = vcmask 130048
    %v325 = vsel %vm324, %v322, 0.0
    %326 = vadd.xlane.f32.xlu0 %v325
    %v327 = vpop.xlane.xlu0 %326
    %v328 = vsel %vm324, %v323, 0.0
    %329 = vadd.xlane.f32.xlu0 %v328
    %v330 = vpop.xlane.xlu0 %329
    %s331 = sld [smem:[#allocation2 + $0x1]]
    %v332 = vstv %s331
    %v333 = vadd.f32 %v327, %v332
    %v334 = vadd.f32 %v330, %v332
    %v335 = vlaneseq
    %v336 = vand.u32 %v335, 127
    %vm337 = vcmp.lt.s32.totalorder %v336, 10
    %v338 = vsel %vm337, %v316, inf
    %v339 = vsel %vm337, %v317, inf
    %v340 = vsel %vm324, %v338, inf
    %341 = vmin.xlane.f32.xlu0 %v340
    %v342 = vpop.xlane.xlu0 %341
    %v343 = vsel %vm324, %v339, inf
    %344 = vmin.xlane.f32.xlu0 %v343
    %v345 = vpop.xlane.xlu0 %344
    %v346 = vmin.f32 %v342, %v345
    %v347 = vrot.slane %v346, 4
    %v348 = vmin.f32 %v346, %v347
    %v349 = vrot.slane %v348, 2
    %v350 = vmin.f32 %v348, %v349
    %v351 = vrot.slane %v350, 1
    %v352 = vmin.f32 %v350, %v351
    %v353 = vsel %vm337, %v316, -inf
    %v354 = vsel %vm337, %v317, -inf
    %v355 = vsel %vm324, %v353, -inf
    %356 = vmax.xlane.f32.xlu0 %v355
    %v357 = vpop.xlane.xlu0 %356
    %v358 = vsel %vm324, %v354, -inf
    %359 = vmax.xlane.f32.xlu0 %v358
    %v360 = vpop.xlane.xlu0 %359
    %v361 = vmax.f32 %v357, %v360
    %v362 = vrot.slane %v361, 4
    %v363 = vmax.f32 %v361, %v362
    %v364 = vrot.slane %v363, 2
    %v365 = vmax.f32 %v363, %v364
    %v366 = vrot.slane %v365, 1
    %v367 = vmax.f32 %v365, %v366
    %v368 = vsub.f32 %v367, %v352
    %v369 = vmax.f32 %v368, 1e-08
    %v370 = vrcp.pop %v369
    %v371 = vsub.f32 %v316, %v352
    %v372 = vsub.f32 %v317, %v352
    %v373 = vmul.f32 %v370, 1.9
    %v374 = vmul.f32 %v371, %v373
    %v375 = vmul.f32 %v372, %v373
    %v376 = vsub.f32 %v374, 0.95
    %v377 = vsub.f32 %v375, 0.95
    %v378 = vsel %vm337, %v376, %v333
    %v379 = vsel %vm337, %v377, %v334
    %v380 = vld [vmem:[%s2] sm:$0xff]
    %v381 = vld [vmem:[%s2 + $0x8] sm:$0xff]
    %s382 = sld [smem:[#allocation2]]
    %v383 = vstv %s382
    %v384 = vmul.f32 %v383, %v380
    %v385 = vmul.f32 %v383, %v381
    %v387 = vsel %vm58, %v384, 0
    %v390 = vsel %vm58, %v385, 0
    %v393 = vsel %vm58, %v380, 0
    %v396 = vsel %vm58, %v381, 0
    %398 = vmatprep.subr.mxu0 0.0
    %399 = vmatpush1.xpose.msra.mxu0 %v393
    %400 = vmatprep.subr.mxu0 0.0
    %401 = vmatpush1.xpose.msra.mxu0 %v396
    %402 = vmatprep.subr.mxu0 0.0
    %403 = vmatpush1.xpose.msra.mxu0 0.0
    %404 = vmatprep.subr.mxu0 0.0
    %405 = vmatpush1.xpose.msra.mxu0 0.0
    %406 = vmatprep.subr.mxu0 0.0
    %407 = vmatpush1.xpose.msra.mxu0 0.0
    %408 = vmatprep.subr.mxu0 0.0
    %409 = vmatpush1.xpose.msra.mxu0 0.0
    %410 = vmatprep.subr.mxu0 0.0
    %411 = vmatpush1.xpose.msra.mxu0 0.0
    %412 = vmatprep.subr.mxu0 0.0
    %413 = vmatpush1.xpose.msra.mxu0 0.0
    %414 = vmatprep.subr.mxu0 0.0
    %415 = vmatpush1.xpose.msra.mxu0 0.0
    %416 = vmatprep.subr.mxu0 0.0
    %417 = vmatpush1.xpose.msra.mxu0 0.0
    %418 = vmatprep.subr.mxu0 0.0
    %419 = vmatpush1.xpose.msra.mxu0 0.0
    %420 = vmatprep.subr.mxu0 0.0
    %421 = vmatpush1.xpose.msra.mxu0 0.0
    %422 = vmatprep.subr.mxu0 0.0
    %423 = vmatpush1.xpose.msra.mxu0 0.0
    %424 = vmatprep.subr.mxu0 0.0
    %425 = vmatpush1.xpose.msra.mxu0 0.0
    %426 = vmatprep.subr.mxu0 0.0
    %427 = vmatpush1.xpose.msra.mxu0 0.0
    %428 = vmatprep.subr.mxu0 0.0
    %429 = vmatpush1.xpose.msra.mxu0 0.0
    %430 = vmatprep.subr.mxu0 0.0
    %431 = vmatpush1.xpose.msra.mxu0 0.0
    %432 = vmatprep.subr.mxu0 0.0
    %433 = vmatpush1.xpose.msra.mxu0 0.0
    %434 = vmatprep.subr.mxu0 0.0
    %435 = vmatpush1.xpose.msra.mxu0 0.0
    %436 = vmatprep.subr.mxu0 0.0
    %437 = vmatpush1.xpose.msra.mxu0 0.0
    %438 = vmatprep.subr.mxu0 0.0
    %439 = vmatpush1.xpose.msra.mxu0 0.0
    %440 = vmatprep.subr.mxu0 0.0
    %441 = vmatpush1.xpose.msra.mxu0 0.0
    %442 = vmatprep.subr.mxu0 0.0
    %443 = vmatpush1.xpose.msra.mxu0 0.0
    %444 = vmatprep.subr.mxu0 0.0
    %445 = vmatpush1.xpose.msra.mxu0 0.0
    %446 = vmatprep.subr.mxu0 0.0
    %447 = vmatpush1.xpose.msra.mxu0 0.0
    %448 = vmatprep.subr.mxu0 0.0
    %449 = vmatpush1.xpose.msra.mxu0 0.0
    %450 = vmatprep.subr.mxu0 0.0
    %451 = vmatpush1.xpose.msra.mxu0 0.0
    %452 = vmatprep.subr.mxu0 0.0
    %453 = vmatpush1.xpose.msra.mxu0 0.0
    %454 = vmatprep.subr.mxu0 0.0
    %455 = vmatpush1.xpose.msra.mxu0 0.0
    %456 = vmatprep.subr.mxu0 0.0
    %457 = vmatpush1.xpose.msra.mxu0 0.0
    %458 = vmatprep.subr.mxu0 0.0
    %459 = vmatpush1.xpose.msra.mxu0 0.0
    %460 = vmatprep.subr.mxu0 0.0
    %461 = vmatpush1.xpose.msra.mxu0 0.0
    %462 = vmatprep.mubr.f32.mxu0 0.0
    %463 = vmatmul.mubr.f32.gmra.mrb[0].mxu0 %v387
    %v464 = vpop.f32.mrb[0].mxu0
    %v465 = vadd.f32 0.0, %v464
    %v466 = vpop.f32.mrb[0].mxu0
    %467 = vmatprep.mubr.f32.mxu0 0.0
    %468 = vmatmul.mubr.f32.gmra.mrb[0].mxu0 %v390
    %v469 = vpop.f32.mrb[0].mxu0
    %v470 = vadd.f32 0.0, %v469
    %v471 = vpop.f32.mrb[0].mxu0
    %472 = vdwg.mxu0
    %475 = vrot.lane.b32.xlu0 %v465, 16
    %v476 = vpop.permute.xlu0 %475
    %477 = vrot.lane.b32.xlu0 %v470, 16
    %v478 = vpop.permute.xlu0 %477
    %v481 = vsel %vm324, %v378, %v476
    %v482 = vsel %vm324, %v379, %v478
    %vm483 = vcmask 261120
    %v484 = vsel %vm483, %v481, 0.0
    %v485 = vsel %vm483, %v482, 0.0
    %486 = vst [vmem:[%s5] sm:$0xff] %v484
    %487 = vst [vmem:[%s5 + $0x8] sm:$0xff] %v485
    // Predicated region
    $region26: #{value_fused_forward.1} parent=1 // pred_check
      _
    $region27: #{value_fused_forward.1} parent=1 // pred_check_branch
      %489 = sbr.rel (0) target = $region29
    $region28: #{value_fused_forward.1} parent=1 // pred_region
      _
    $region29: #{value_fused_forward.1} parent=1 // pred_fallthru
      _
    // Predicated region
    $region30: #{value_fused_forward.1} parent=1 // pred_check
      _
    $region31: #{value_fused_forward.1} parent=1 // pred_check_branch
      %491 = sbr.rel (0) target = $region33
    $region32: #{value_fused_forward.1} parent=1 // pred_region
      _
    $region33: #{value_fused_forward.1} parent=1 // pred_fallthru
      _
    %492 = vsyncpa [#allocation3], 1

</llo_original>
